<compile_context>
chip_gen: v7x
topology: tpu7x:2x2x1
jax: 0.10.0
libtpu: 0.0.40
codegen_flags: <defaults>
</compile_context>

<pallas_src>
import functools

import jax
import jax.numpy as jnp
from jax.experimental import pallas as pl
from jax.experimental.pallas import tpu as pltpu


# ---------------------------------------------------------------------------
# Kernel: fused broadcast + channel concat, lane-dense, one store per tile.
# ---------------------------------------------------------------------------
def _concat_pe_kernel(x_ref, pe_ref, o_ref):
    # x_ref : (bb, C,     nn)  VMEM  -- inputs, channels on the sublane axis
    # pe_ref: (P,         nn)  VMEM  -- batch-invariant Fourier slab (pre-cast)
    # o_ref : (bb, C + P, nn)  VMEM  -- concat on the sublane axis
    bb, C, nn = x_ref.shape
    P = pe_ref.shape[0]
    pe_b = jnp.broadcast_to(pe_ref[...][None], (bb, P, nn))
    # Single full-tile, lane-dense store (all 128 lanes used every vst).
    o_ref[...] = jnp.concatenate([x_ref[...], pe_b], axis=1)


def _largest_divisor_leq(n, k):
    k = max(1, min(n, int(k)))
    while n % k:
        k -= 1
    return k


@functools.partial(
    jax.jit,
    static_argnames=("target_block_bytes", "vmem_limit_bytes", "channels_last_out"),
)
def position_embedding_forward(
    inputs,
    pos_embedding,
    *,
    target_block_bytes=4 * 1024 * 1024,   # ~4 MiB of in+out traffic per step
    vmem_limit_bytes=None,
    channels_last_out=True,
):
    """forward(): concat(inputs, broadcast(pos_embedding)) on the channel axis.

    inputs:        (B, F, T, C) channels-last (module contract)
    pos_embedding: (F, T, 2 * num_fourier_bases), precomputed batch-invariant
    """
    B, F, T, C = inputs.shape
    Fp, Tp, P = pos_embedding.shape
    assert (Fp, Tp) == (F, T), "pos_embedding spatial dims must match inputs"
    N = F * T
    out_c = C + P
    dtype = inputs.dtype
    dbytes = dtype.itemsize

    # Pre-cast the slab once (no per-call cast in the kernel; half the pe
    # DMA/VMEM footprint in bf16).
    pe = pos_embedding.astype(dtype)

    # Lane-dense presentation: F*T on lanes, channels on sublanes.
    # TODO(synk): in production keep (B, C+P, F*T) end-to-end and fuse these
    # layout transposes into the producer/consumer instead of the wrapper.
    x_cf = jnp.transpose(inputs, (0, 3, 1, 2)).reshape(B, C, N)
    pe_cf = jnp.transpose(pe, (2, 0, 1)).reshape(P, N)

    # ---- block sizing: big blocks, few steps, within v7x VMEM budget -------
    per_batch_bytes = (C + out_c) * N * dbytes          # in + out per batch el.
    bb = _largest_divisor_leq(B, max(1, target_block_bytes // max(per_batch_bytes, 1)))

    nn = N
    if bb == 1 and per_batch_bytes > target_block_bytes and N % 128 == 0:
        # Single batch element still too big: tile the lane axis in x128 steps.
        per_lane_bytes = (C + out_c) * dbytes
        cand = max(128, (target_block_bytes // max(per_lane_bytes, 1)) // 128 * 128)
        cand = min(cand, N)
        while N % cand:
            cand -= 128
        nn = max(cand, 128)

    n_b, n_n = B // bb, N // nn

    # pe needs only one buffer when its block index is grid-invariant.
    pe_grid_invariant = (n_n == 1)
    pe_bufs = 1 if pe_grid_invariant else 2

    # Raise the scoped-VMEM limit only if the chosen blocks actually need it
    # (default scoped limits: 16 MiB v5e, 32 MiB v6e/v7x).
    need = (2 * bb * C * nn + 2 * bb * out_c * nn + pe_bufs * P * nn) * dbytes
    if vmem_limit_bytes is None and need > (14 << 20):
        vmem_limit_bytes = int(need) + (4 << 20)

    pe_spec_kwargs = {}
    if pe_grid_invariant:
        pe_spec_kwargs["pipeline_mode"] = pl.Buffered(1)

    out_cf = pl.pallas_call(
        _concat_pe_kernel,
        out_shape=jax.ShapeDtypeStruct((B, out_c, N), dtype),
        grid_spec=pltpu.PrefetchScalarGridSpec(
            num_scalar_prefetch=0,
            grid=(n_b, n_n),
            in_specs=[
                pl.BlockSpec((bb, C, nn), lambda b, n: (b, 0, n)),
                # Constant block index across the batch axis: fetched once.
                pl.BlockSpec((P, nn), lambda b, n: (0, n), **pe_spec_kwargs),
            ],
            out_specs=pl.BlockSpec((bb, out_c, nn), lambda b, n: (b, 0, n)),
        ),
        compiler_params=pltpu.CompilerParams(
            # Pure copy, no reduction: both axes independent.  "parallel" lets
            # v7x shard steps across its 2 TensorCores (no-op on v5e/v6e).
            dimension_semantics=("parallel", "parallel"),
            vmem_limit_bytes=vmem_limit_bytes,
        ),
    )(x_cf, pe_cf)

    if not channels_last_out:
        return out_cf.reshape(B, out_c, F, T)
    # Restore the module's channels-last contract.
    return jnp.transpose(out_cf.reshape(B, out_c, F, T), (0, 2, 3, 1))


# ---------------------------------------------------------------------------
# One-time (init) slab construction + pure-JAX reference.
# ---------------------------------------------------------------------------
def make_gradient_grid(F, T, value_range=(-1.0, 1.0)):
    """_create_gradient_grid((F, T), [-1, 1]) -> (F, T, 2)."""
    fs = jnp.linspace(value_range[0], value_range[1], F, dtype=jnp.float32)
    ts = jnp.linspace(value_range[0], value_range[1], T, dtype=jnp.float32)
    gf, gt = jnp.meshgrid(fs, ts, indexing="ij")
    return jnp.stack([gf, gt], axis=-1).astype(jnp.float32)


def make_position_embedding(F, T, projection, value_range=(-1.0, 1.0)):
    """_make_pos_embedding_tensor: (F, T, 2*nfb) Fourier slab, built once.

    Broadcast FMAs (VPU-friendly) instead of the degenerate (F*T,2)@(2,nfb)
    matmul — numerically identical to the PyTorch init.
    """
    fs = jnp.linspace(value_range[0], value_range[1], F, dtype=jnp.float32)
    ts = jnp.linspace(value_range[0], value_range[1], T, dtype=jnp.float32)
    pe = jnp.pi * (fs[:, None, None] * projection[0][None, None, :]
                   + ts[None, :, None] * projection[1][None, None, :])
    return jnp.concatenate([jnp.sin(pe), jnp.sin(pe + 0.5 * jnp.pi)],
                           axis=-1).astype(jnp.float32)          # (F, T, 2*nfb)


def reference_forward(inputs, grid, projection):
    """Pure-JAX reference of the PyTorch module's semantics (matmul path)."""
    pe = jnp.pi * jnp.matmul(grid, projection)                   # (F, T, nfb)
    pe = jnp.concatenate([jnp.sin(pe), jnp.sin(pe + 0.5 * jnp.pi)], axis=-1)
    pe = jnp.broadcast_to(pe[None], inputs.shape[:-1] + (pe.shape[-1],))
    return jnp.concatenate([inputs, pe], axis=-1)


if __name__ == "__main__":
    # Small shapes consistent with the module: input_ft = (F, T), channels-last.
    B, F, T, C = 2, 16, 16, 4
    NUM_FOURIER_BASES = 3

    key = jax.random.PRNGKey(0)
    k_in, k_proj = jax.random.split(key)

    inputs = jax.random.normal(k_in, (B, F, T, C), dtype=jnp.float32)
    # Deterministic stand-in for torch.normal(0, 1, size=(2, nfb)).
    projection = jax.random.normal(k_proj, (2, NUM_FOURIER_BASES),
                                   dtype=jnp.float32)

    # Module "__init__": batch-invariant positional-embedding slab, built once.
    pos_embedding = make_position_embedding(F, T, projection)     # (F, T, 6)

    out = position_embedding_forward(inputs, pos_embedding)
    out = jax.block_until_ready(out)

    ref = reference_forward(inputs, make_gradient_grid(F, T), projection)
    assert out.shape == (B, F, T, C + 2 * NUM_FOURIER_BASES), out.shape
    assert jnp.allclose(out, ref, atol=1e-5, rtol=1e-5), "mismatch vs reference"

    print("KERNEL_OK")
</pallas_src>

<mosaic_0001>
module attributes {stable_mosaic.version = 11 : i64} {
  func.func @_concat_pe_kernel(%arg0: i32, %arg1: i32, %arg2: memref<2x4x256xf32, #tpu.memory_space<vmem>>, %arg3: memref<6x256xf32, #tpu.memory_space<vmem>>, %arg4: memref<2x10x256xf32, #tpu.memory_space<vmem>>) attributes {dimension_semantics = [#tpu.dimension_semantics<parallel>, #tpu.dimension_semantics<parallel>], iteration_bounds = array<i64: 1, 1>, scalar_prefetch = 0 : i64, scratch_operands = 0 : i64, tpu.core_type = #tpu.core_type<tc>, window_params = [{transform_indices = @transform_0, window_bounds = array<i64: 2, 4, 256>}, {pipeline_mode = #tpu.pipeline_mode<synchronous>, transform_indices = @transform_1, window_bounds = array<i64: 6, 256>}, {transform_indices = @transform_2, window_bounds = array<i64: 2, 10, 256>}]} {
    %c0 = arith.constant 0 : index
    %c0_0 = arith.constant 0 : index
    %0 = vector.load %arg3[%c0, %c0_0] : memref<6x256xf32, #tpu.memory_space<vmem>>, vector<6x256xf32>
    %1 = vector.shape_cast %0 : vector<6x256xf32> to vector<1x6x256xf32>
    %2 = vector.shape_cast %1 : vector<1x6x256xf32> to vector<1x6x256xf32>
    %3 = vector.broadcast %2 : vector<1x6x256xf32> to vector<2x6x256xf32>
    %c0_1 = arith.constant 0 : index
    %c0_2 = arith.constant 0 : index
    %c0_3 = arith.constant 0 : index
    %4 = vector.load %arg2[%c0_1, %c0_2, %c0_3] : memref<2x4x256xf32, #tpu.memory_space<vmem>>, vector<2x4x256xf32>
    %5 = tpu.concatenate %4, %3 in 1 : vector<2x4x256xf32>, vector<2x6x256xf32> -> vector<2x10x256xf32>
    %c0_4 = arith.constant 0 : index
    %c0_5 = arith.constant 0 : index
    %c0_6 = arith.constant 0 : index
    %6 = vector.load %arg4[%c0_4, %c0_5, %c0_6] : memref<2x10x256xf32, #tpu.memory_space<vmem>>, vector<2x10x256xf32>
    tpu.vector_store %arg4[%c0_4, %c0_5, %c0_6], %5 {strides = array<i32>} : memref<2x10x256xf32, #tpu.memory_space<vmem>>, vector<2x10x256xf32>,
    return
  }
  func.func @transform_0(%arg0: i32, %arg1: i32) -> (i32, i32, i32) {
    %c0_i32 = arith.constant 0 : i32
    %c0_i32_0 = arith.constant 0 : i32
    return %arg0, %c0_i32, %arg1 : i32, i32, i32
  }
  func.func @transform_1(%arg0: i32, %arg1: i32) -> (i32, i32) {
    %c0_i32 = arith.constant 0 : i32
    %c0_i32_0 = arith.constant 0 : i32
    return %c0_i32, %arg1 : i32, i32
  }
  func.func @transform_2(%arg0: i32, %arg1: i32) -> (i32, i32, i32) {
    %c0_i32 = arith.constant 0 : i32
    %c0_i32_0 = arith.constant 0 : i32
    return %arg0, %c0_i32, %arg1 : i32, i32, i32
  }
}

</mosaic_0001>

<llo_original>
// kernel: position_embedding_forward.1
$region0: #{position_embedding_forward.1}
  #allocation0 [shape = 'u32[]', space=smem, size = 0x4, offset = 0x4, fixed_abs, tag = 'smem constant byte address 0x4 - core index']
  #allocation1 [shape = 'u32[144,128]{1,0:T(1,128)}', space=vmem, size = 0x12000, scoped, tag = 'internal scratch']
  %s0 = inlined_call_operand.vmem [shape: f32[2,4,256], index: 0, kind: input, shape index: {}]
  %s1 = inlined_call_operand.vmem [shape: f32[6,256], index: 1, kind: input, shape index: {}]
  %s2 = inlined_call_operand.vmem [shape: f32[2,10,256], index: 2, kind: output, shape index: {}]
  %s3 = sld [smem:[#allocation0]]
  $region18: #{position_embedding_forward.1} parent=0
    _
  %s5 = ssub.s32 1, %s3
  %s6 = scalar_select 0, %s5, %s3
  // Predicated region
  $region2: #{position_embedding_forward.1} parent=0 // pred_check
    _
  $region3: #{position_embedding_forward.1} parent=0 // pred_check_branch
    %8 = sbr.rel (0) target = $region5
  $region4: #{position_embedding_forward.1} parent=0 // pred_region
    _
  $region5: #{position_embedding_forward.1} parent=0 // pred_fallthru
    _
  // Predicated region
  $region6: #{position_embedding_forward.1} parent=0 // pred_check
    _
  $region7: #{position_embedding_forward.1} parent=0 // pred_check_branch
    %10 = sbr.rel (0) target = $region9
  $region8: #{position_embedding_forward.1} parent=0 // pred_region
    _
  $region9: #{position_embedding_forward.1} parent=0 // pred_fallthru
    _
  %v11 = vld [vmem:[%s1] sm:$0x3f]
  %v12 = vld [vmem:[%s1 + $0x8] sm:$0x3f]
  %v13 = vld [vmem:[%s0] sm:$0xff]
  %v14 = vld [vmem:[%s0 + $0x8] sm:$0xff]
  %v17 = vcombine.high %v13, %v13
  %v18 = vcombine.high %v14, %v14
  %v23 = vrot.slane %v11, 4
  %v24 = vrot.slane %v12, 4
  %vm27 = vcmask 1043456
  %v28 = vsel %vm27, %v13, %v23
  %v29 = vsel %vm27, %v17, %v24
  %v30 = vsel %vm27, %v14, %v23
  %v31 = vsel %vm27, %v18, %v24
  %32 = vst [vmem:[%s2] sm:$0xff] %v28
  %33 = vst [vmem:[%s2 + $0x8] sm:$0xff] %v29
  %34 = vst [vmem:[%s2 + $0x10] sm:$0x3] %v23
  %35 = vst [vmem:[%s2 + $0x18] sm:$0x3] %v24
  %36 = vst [vmem:[%s2 + $0x20] sm:$0xff] %v30
  %37 = vst [vmem:[%s2 + $0x28] sm:$0xff] %v31
  %38 = vst [vmem:[%s2 + $0x30] sm:$0x3] %v23
  %39 = vst [vmem:[%s2 + $0x38] sm:$0x3] %v24
  // Predicated region
  $region10: #{position_embedding_forward.1} parent=0 // pred_check
    _
  $region11: #{position_embedding_forward.1} parent=0 // pred_check_branch
    %41 = sbr.rel (0) target = $region13
  $region12: #{position_embedding_forward.1} parent=0 // pred_region
    _
  $region13: #{position_embedding_forward.1} parent=0 // pred_fallthru
    _
  // Predicated region
  $region14: #{position_embedding_forward.1} parent=0 // pred_check
    _
  $region15: #{position_embedding_forward.1} parent=0 // pred_check_branch
    %43 = sbr.rel (0) target = $region17
  $region16: #{position_embedding_forward.1} parent=0 // pred_region
    _
  $region17: #{position_embedding_forward.1} parent=0 // pred_fallthru
    _

</llo_original>
